<compile_context>
chip_gen: v7x
topology: tpu7x:2x2x1
jax: 0.10.0
libtpu: 0.0.40
codegen_flags: <defaults>
</compile_context>

<pallas_src>
import functools

import jax
import jax.numpy as jnp
from jax.experimental import pallas as pl
from jax.experimental.pallas import tpu as pltpu


def _bikl_kernel(s_ref, t_ref, lab_ref, out_ref, *, temp, alpha, beta, n_valid):
    i = pl.program_id(0)
    s = s_ref[...].astype(jnp.float32)            # (TB, C) student logits
    t = t_ref[...].astype(jnp.float32)            # (TB, C) teacher logits
    lab = lab_ref[...]                            # (TB, 1) int32 labels
    TB, C = s.shape
    inv_t = 1.0 / temp

    # Row-validity mask: handles the zero-padded tail when B % TB != 0.
    row_ids = i * TB + jax.lax.broadcasted_iota(jnp.int32, (TB, 1), 0)
    valid = (row_ids < n_valid).astype(jnp.float32)                    # (TB, 1)

    # ---- student: shared row max, two exp passes (T=1 for CE, T=temp for KL) --
    m_s = jnp.max(s, axis=-1, keepdims=True)                           # (TB, 1)
    d_s = s - m_s                                                      # (TB, C)
    e1 = jnp.exp(d_s)                                                  # exp pass 1
    lse1 = m_s + jnp.log(jnp.sum(e1, axis=-1, keepdims=True))          # logsumexp(s)

    z_s = d_s * inv_t                                                  # (s - max)/T
    e_s = jnp.exp(z_s)                                                 # exp pass 2
    den_s = jnp.sum(e_s, axis=-1, keepdims=True)
    ls_s = z_s - jnp.log(den_s)                                        # log_softmax(s/T)
    p_s = e_s * pl.reciprocal(den_s, approx=False)                     # softmax(s/T)

    # ---- teacher: one exp pass at T=temp ------------------------------------
    m_t = jnp.max(t, axis=-1, keepdims=True)
    z_t = (t - m_t) * inv_t
    e_t = jnp.exp(z_t)                                                 # exp pass 3
    den_t = jnp.sum(e_t, axis=-1, keepdims=True)
    ls_t = z_t - jnp.log(den_t)
    p_t = e_t * pl.reciprocal(den_t, approx=False)

    # ---- hard CE: logsumexp(s) - s[label]  (one-hot dot, no lane gather) -----
    cls = jax.lax.broadcasted_iota(jnp.int32, (TB, C), 1)              # hoisted once
    onehot = (cls == lab).astype(jnp.float32)
    s_y = jnp.sum(onehot * s, axis=-1, keepdims=True)                  # (TB, 1)
    hard_sum = jnp.sum(valid * (lse1 - s_y))

    # ---- folded bidirectional KL: sum((p_t - p_s) * (ls_t - ls_s)) -----------
    kl_rows = jnp.sum((p_t - p_s) * (ls_t - ls_s), axis=-1, keepdims=True)
    kl_sum = jnp.sum(valid * kl_rows)

    inv_b = 1.0 / float(n_valid)
    partial = alpha * hard_sum * inv_b + beta * (temp * temp) * kl_sum * inv_b

    # Per-block partial loss -> element [0, 0] of this block's (8, 128) output
    # tile (lane-aligned, layout-safe); the wrapper sums all partials.
    r = jax.lax.broadcasted_iota(jnp.int32, (8, 128), 0)
    c = jax.lax.broadcasted_iota(jnp.int32, (8, 128), 1)
    out_ref[...] = jnp.where((r == 0) & (c == 0), partial, 0.0).astype(jnp.float32)


def _pick_block_b(batch, n_classes, in_itemsize, vmem_budget_bytes=24 * 1024 * 1024):
    """Pick a batch tile that keeps double-buffered inputs + f32 temporaries
    comfortably inside VMEM on every generation (incl. v7x's 64 MiB)."""
    # 2 inputs x 2 pipeline buffers of (TB, C) plus ~6 live f32 (TB, C) temporaries.
    per_row = n_classes * (2 * 2 * in_itemsize + 6 * 4)
    tb = vmem_budget_bytes // max(per_row, 1)
    tb = max(8, min(512, (int(tb) // 8) * 8))
    b_ceil = -(-batch // 8) * 8
    return min(tb, b_ceil)


def bidirectional_kl(student_logits, teacher_logits, labels,
                     temperature=2.0, alpha=1.0, beta=1.0, *, block_b=None):
    """Pallas TPU implementation of BidirectionalKL.forward (returns a scalar)."""
    B, C = student_logits.shape
    itemsize = jnp.dtype(student_logits.dtype).itemsize
    tb = int(block_b) if block_b is not None else _pick_block_b(B, C, itemsize)
    tb = max(8, (tb // 8) * 8)

    num_blocks = -(-B // tb)
    b_pad = num_blocks * tb
    if b_pad != B:
        pad = b_pad - B
        student_logits = jnp.pad(student_logits, ((0, pad), (0, 0)))
        teacher_logits = jnp.pad(teacher_logits, ((0, pad), (0, 0)))
        labels = jnp.pad(labels, ((0, pad),))
    labels_2d = labels.astype(jnp.int32).reshape(b_pad, 1)

    kernel = functools.partial(
        _bikl_kernel,
        temp=float(temperature), alpha=float(alpha), beta=float(beta), n_valid=B)

    partials = pl.pallas_call(
        kernel,
        out_shape=jax.ShapeDtypeStruct((num_blocks * 8, 128), jnp.float32),
        grid=(num_blocks,),
        in_specs=[
            pl.BlockSpec((tb, C), lambda i: (i, 0)),   # student tile
            pl.BlockSpec((tb, C), lambda i: (i, 0)),   # teacher tile
            pl.BlockSpec((tb, 1), lambda i: (i, 0)),   # labels tile
        ],
        out_specs=pl.BlockSpec((8, 128), lambda i: (i, 0)),
        compiler_params=pltpu.CompilerParams(
            dimension_semantics=("parallel",),          # independent blocks -> 2 TCs on v7x
            vmem_limit_bytes=48 * 1024 * 1024),
    )(student_logits, teacher_logits, labels_2d)

    # Tiny host-side reduction over per-block partial losses.
    return jnp.sum(partials)


def _reference(student_logits, teacher_logits, labels,
               temperature=2.0, alpha=1.0, beta=1.0):
    """Pure-JAX reference matching the PyTorch forward."""
    s = student_logits.astype(jnp.float32)
    t = teacher_logits.astype(jnp.float32)
    B = s.shape[0]
    ls_full = jax.nn.log_softmax(s, axis=1)
    hard = -jnp.mean(jnp.take_along_axis(ls_full, labels[:, None], axis=1))
    ls_s = jax.nn.log_softmax(s / temperature, axis=1)
    ls_t = jax.nn.log_softmax(t / temperature, axis=1)
    p_s, p_t = jnp.exp(ls_s), jnp.exp(ls_t)
    kl1 = jnp.sum(p_t * (ls_t - ls_s)) / B
    kl2 = jnp.sum(p_s * (ls_s - ls_t)) / B
    return alpha * hard + beta * (kl1 + kl2) * temperature ** 2


if __name__ == "__main__":
    key = jax.random.PRNGKey(0)
    k1, k2, k3 = jax.random.split(key, 3)

    # Test 1: single block.
    B, C = 8, 32
    student = jax.random.normal(k1, (B, C), dtype=jnp.float32) * 2.0
    teacher = jax.random.normal(k2, (B, C), dtype=jnp.float32) * 2.0
    labels = jax.random.randint(k3, (B,), 0, C, dtype=jnp.int32)

    loss = jax.block_until_ready(
        bidirectional_kl(student, teacher, labels, 2.0, 1.0, 1.0))
    ref = _reference(student, teacher, labels, 2.0, 1.0, 1.0)
    assert jnp.allclose(loss, ref, rtol=1e-5, atol=1e-5), (loss, ref)

    # Test 2: multi-block grid with a ragged batch (B not a multiple of the tile).
    k4, k5, k6 = jax.random.split(k1, 3)
    B2, C2 = 20, 32
    student2 = jax.random.normal(k4, (B2, C2), dtype=jnp.float32) * 2.0
    teacher2 = jax.random.normal(k5, (B2, C2), dtype=jnp.float32) * 2.0
    labels2 = jax.random.randint(k6, (B2,), 0, C2, dtype=jnp.int32)

    loss2 = jax.block_until_ready(
        bidirectional_kl(student2, teacher2, labels2, 3.0, 0.7, 0.3, block_b=8))
    ref2 = _reference(student2, teacher2, labels2, 3.0, 0.7, 0.3)
    assert jnp.allclose(loss2, ref2, rtol=1e-5, atol=1e-5), (loss2, ref2)

    print("KERNEL_OK")
</pallas_src>

<mosaic_0001>
module attributes {stable_mosaic.version = 11 : i64} {
  func.func @_bikl_kernel(%arg0: i32, %arg1: memref<8x32xf32, #tpu.memory_space<vmem>>, %arg2: memref<8x32xf32, #tpu.memory_space<vmem>>, %arg3: memref<8x1xi32, #tpu.memory_space<vmem>>, %arg4: memref<8x128xf32, #tpu.memory_space<vmem>>) attributes {dimension_semantics = [#tpu.dimension_semantics<parallel>], iteration_bounds = array<i64: 1>, scalar_prefetch = 0 : i64, scratch_operands = 0 : i64, tpu.core_type = #tpu.core_type<tc>, window_params = [{transform_indices = @transform_0, window_bounds = array<i64: 8, 32>}, {transform_indices = @transform_1, window_bounds = array<i64: 8, 32>}, {transform_indices = @transform_2, window_bounds = array<i64: 8, 1>}, {transform_indices = @transform_3, window_bounds = array<i64: 8, 128>}]} {
    %c0 = arith.constant 0 : index
    %c0_0 = arith.constant 0 : index
    %0 = vector.load %arg1[%c0, %c0_0] : memref<8x32xf32, #tpu.memory_space<vmem>>, vector<8x32xf32>
    %c0_1 = arith.constant 0 : index
    %c0_2 = arith.constant 0 : index
    %1 = vector.load %arg2[%c0_1, %c0_2] : memref<8x32xf32, #tpu.memory_space<vmem>>, vector<8x32xf32>
    %c0_3 = arith.constant 0 : index
    %c0_4 = arith.constant 0 : index
    %2 = vector.load %arg3[%c0_3, %c0_4] : memref<8x1xi32, #tpu.memory_space<vmem>>, vector<8x1xi32>
    %c8_i32 = arith.constant 8 : i32
    %3 = arith.muli %arg0, %c8_i32 : i32
    %4 = tpu.iota {dimensions = array<i32: 0>} : vector<8x1xi32>
    %5 = vector.broadcast %3 : i32 to vector<8x1xi32>
    %6 = arith.addi %5, %4 : vector<8x1xi32>
    %c8_i32_5 = arith.constant 8 : i32
    %7 = vector.broadcast %c8_i32_5 : i32 to vector<8x1xi32>
    %8 = arith.cmpi slt, %6, %7 : vector<8x1xi32>
    %9 = arith.extui %8 : vector<8x1xi1> to vector<8x1xi32>
    %10 = arith.sitofp %9 : vector<8x1xi32> to vector<8x1xf32>
    %cst = arith.constant dense<0xFF800000> : vector<8xf32>
    %11 = vector.multi_reduction <maximumf>, %0, %cst [1] : vector<8x32xf32> to vector<8xf32>
    %12 = vector.shape_cast %11 : vector<8xf32> to vector<8x1xf32>
    %13 = vector.broadcast %12 : vector<8x1xf32> to vector<8x32xf32>
    %14 = arith.subf %0, %13 : vector<8x32xf32>
    %15 = math.exp %14 : vector<8x32xf32>
    %cst_6 = arith.constant dense<0.000000e+00> : vector<8xf32>
    %16 = vector.multi_reduction <add>, %15, %cst_6 [1] : vector<8x32xf32> to vector<8xf32>
    %17 = vector.shape_cast %16 : vector<8xf32> to vector<8x1xf32>
    %18 = math.log %17 : vector<8x1xf32>
    %19 = arith.addf %12, %18 : vector<8x1xf32>
    %cst_7 = arith.constant 5.000000e-01 : f32
    %20 = vector.broadcast %cst_7 : f32 to vector<8x32xf32>
    %21 = arith.mulf %14, %20 : vector<8x32xf32>
    %22 = math.exp %21 : vector<8x32xf32>
    %cst_8 = arith.constant dense<0.000000e+00> : vector<8xf32>
    %23 = vector.multi_reduction <add>, %22, %cst_8 [1] : vector<8x32xf32> to vector<8xf32>
    %24 = vector.shape_cast %23 : vector<8xf32> to vector<8x1xf32>
    %25 = math.log %24 : vector<8x1xf32>
    %26 = vector.broadcast %25 : vector<8x1xf32> to vector<8x32xf32>
    %27 = arith.subf %21, %26 : vector<8x32xf32>
    %28 = tpu.reciprocal %24 : vector<8x1xf32> -> vector<8x1xf32>
    %29 = vector.broadcast %28 : vector<8x1xf32> to vector<8x32xf32>
    %30 = arith.mulf %22, %29 : vector<8x32xf32>
    %cst_9 = arith.constant dense<0xFF800000> : vector<8xf32>
    %31 = vector.multi_reduction <maximumf>, %1, %cst_9 [1] : vector<8x32xf32> to vector<8xf32>
    %32 = vector.shape_cast %31 : vector<8xf32> to vector<8x1xf32>
    %33 = vector.broadcast %32 : vector<8x1xf32> to vector<8x32xf32>
    %34 = arith.subf %1, %33 : vector<8x32xf32>
    %cst_10 = arith.constant 5.000000e-01 : f32
    %35 = vector.broadcast %cst_10 : f32 to vector<8x32xf32>
    %36 = arith.mulf %34, %35 : vector<8x32xf32>
    %37 = math.exp %36 : vector<8x32xf32>
    %cst_11 = arith.constant dense<0.000000e+00> : vector<8xf32>
    %38 = vector.multi_reduction <add>, %37, %cst_11 [1] : vector<8x32xf32> to vector<8xf32>
    %39 = vector.shape_cast %38 : vector<8xf32> to vector<8x1xf32>
    %40 = math.log %39 : vector<8x1xf32>
    %41 = vector.broadcast %40 : vector<8x1xf32> to vector<8x32xf32>
    %42 = arith.subf %36, %41 : vector<8x32xf32>
    %43 = tpu.reciprocal %39 : vector<8x1xf32> -> vector<8x1xf32>
    %44 = vector.broadcast %43 : vector<8x1xf32> to vector<8x32xf32>
    %45 = arith.mulf %37, %44 : vector<8x32xf32>
    %46 = tpu.iota {dimensions = array<i32: 1>} : vector<8x32xi32>
    %47 = vector.broadcast %2 : vector<8x1xi32> to vector<8x32xi32>
    %48 = arith.cmpi eq, %46, %47 : vector<8x32xi32>
    %49 = arith.extui %48 : vector<8x32xi1> to vector<8x32xi32>
    %50 = arith.sitofp %49 : vector<8x32xi32> to vector<8x32xf32>
    %51 = arith.mulf %50, %0 : vector<8x32xf32>
    %cst_12 = arith.constant dense<0.000000e+00> : vector<8xf32>
    %52 = vector.multi_reduction <add>, %51, %cst_12 [1] : vector<8x32xf32> to vector<8xf32>
    %53 = vector.shape_cast %52 : vector<8xf32> to vector<8x1xf32>
    %54 = arith.subf %19, %53 : vector<8x1xf32>
    %55 = arith.mulf %10, %54 : vector<8x1xf32>
    %56 = vector.shape_cast %55 : vector<8x1xf32> to vector<1x8x1xf32>
    %cst_13 = arith.constant dense<0.000000e+00> : vector<1xf32>
    %57 = vector.multi_reduction <add>, %56, %cst_13 [1, 2] : vector<1x8x1xf32> to vector<1xf32>
    %58 = vector.shape_cast %57 : vector<1xf32> to vector<1x1x1xf32>
    %59 = vector.extract %58[0, 0, 0] : f32 from vector<1x1x1xf32>
    %60 = arith.subf %45, %30 : vector<8x32xf32>
    %61 = arith.subf %42, %27 : vector<8x32xf32>
    %62 = arith.mulf %60, %61 : vector<8x32xf32>
    %cst_14 = arith.constant dense<0.000000e+00> : vector<8xf32>
    %63 = vector.multi_reduction <add>, %62, %cst_14 [1] : vector<8x32xf32> to vector<8xf32>
    %64 = vector.shape_cast %63 : vector<8xf32> to vector<8x1xf32>
    %65 = arith.mulf %10, %64 : vector<8x1xf32>
    %66 = vector.shape_cast %65 : vector<8x1xf32> to vector<1x8x1xf32>
    %cst_15 = arith.constant dense<0.000000e+00> : vector<1xf32>
    %67 = vector.multi_reduction <add>, %66, %cst_15 [1, 2] : vector<1x8x1xf32> to vector<1xf32>
    %68 = vector.shape_cast %67 : vector<1xf32> to vector<1x1x1xf32>
    %69 = vector.extract %68[0, 0, 0] : f32 from vector<1x1x1xf32>
    %cst_16 = arith.constant 1.000000e+00 : f32
    %70 = arith.mulf %cst_16, %59 : f32
    %cst_17 = arith.constant 1.250000e-01 : f32
    %71 = arith.mulf %70, %cst_17 : f32
    %cst_18 = arith.constant 4.000000e+00 : f32
    %72 = arith.mulf %cst_18, %69 : f32
    %cst_19 = arith.constant 1.250000e-01 : f32
    %73 = arith.mulf %72, %cst_19 : f32
    %74 = arith.addf %71, %73 : f32
    %75 = tpu.iota {dimensions = array<i32: 0>} : vector<8x128xi32>
    %76 = tpu.iota {dimensions = array<i32: 1>} : vector<8x128xi32>
    %c0_i32 = arith.constant 0 : i32
    %77 = vector.broadcast %c0_i32 : i32 to vector<8x128xi32>
    %78 = arith.cmpi eq, %75, %77 : vector<8x128xi32>
    %c0_i32_20 = arith.constant 0 : i32
    %79 = vector.broadcast %c0_i32_20 : i32 to vector<8x128xi32>
    %80 = arith.cmpi eq, %76, %79 : vector<8x128xi32>
    %81 = arith.andi %78, %80 : vector<8x128xi1>
    %cst_21 = arith.constant 0.000000e+00 : f32
    %82 = vector.broadcast %74 : f32 to vector<8x128xf32>
    %83 = vector.broadcast %cst_21 : f32 to vector<8x128xf32>
    %84 = arith.select %81, %82, %83 : vector<8x128xi1>, vector<8x128xf32>
    %c0_22 = arith.constant 0 : index
    %c0_23 = arith.constant 0 : index
    %85 = vector.load %arg4[%c0_22, %c0_23] : memref<8x128xf32, #tpu.memory_space<vmem>>, vector<8x128xf32>
    tpu.vector_store %arg4[%c0_22, %c0_23], %84 {strides = array<i32>} : memref<8x128xf32, #tpu.memory_space<vmem>>, vector<8x128xf32>,
    return
  }
  func.func @transform_0(%arg0: i32) -> (i32, i32) {
    %c0_i32 = arith.constant 0 : i32
    %c0_i32_0 = arith.constant 0 : i32
    return %arg0, %c0_i32 : i32, i32
  }
  func.func @transform_1(%arg0: i32) -> (i32, i32) {
    %c0_i32 = arith.constant 0 : i32
    %c0_i32_0 = arith.constant 0 : i32
    return %arg0, %c0_i32 : i32, i32
  }
  func.func @transform_2(%arg0: i32) -> (i32, i32) {
    %c0_i32 = arith.constant 0 : i32
    %c0_i32_0 = arith.constant 0 : i32
    return %arg0, %c0_i32 : i32, i32
  }
  func.func @transform_3(%arg0: i32) -> (i32, i32) {
    %c0_i32 = arith.constant 0 : i32
    %c0_i32_0 = arith.constant 0 : i32
    return %arg0, %c0_i32 : i32, i32
  }
}

</mosaic_0001>

<llo_original>
// kernel: tpu_custom_call.1
$region0: #{tpu_custom_call.1}
  #allocation0 [shape = 'u32[]', space=smem, size = 0x4, offset = 0x4, fixed_abs, tag = 'smem constant byte address 0x4 - core index']
  #allocation1 [shape = 'u32[144,128]{1,0:T(1,128)}', space=vmem, size = 0x12000, scoped, tag = 'internal scratch']
  %s0 = inlined_call_operand.vmem [shape: f32[8,32], index: 0, kind: input, shape index: {}]
  %s1 = inlined_call_operand.hbm [shape: f32[8,32], index: 1, kind: input, shape index: {}]
  %s2 = inlined_call_operand.vmem [shape: s32[8,1], index: 2, kind: input, shape index: {}]
  %s3 = inlined_call_operand.hbm [shape: f32[8,128], index: 3, kind: output, shape index: {}]
  %s4 = sld [smem:[#allocation0]]
  $region26: #{tpu_custom_call.1} parent=0
    _
  %s6 = ssub.s32 1, %s4
  %s7 = scalar_select 0, %s6, %s4
  $region1: #{tpu_custom_call.1} parent=0
    #allocation2 [shape = 'u8[4096]{0}', space=vmem, size = 0x1000, scoped, tag = 'input window, operand 1, single buffered']
    #allocation3 [shape = 's32[1]{0}', space=sflag, size = 0x4, scoped, tag = 'scoped memory for tpu_custom_call.1']
    #allocation4 [shape = 's32[1]{0}', space=sflag, size = 0x4, scoped, tag = 'scoped memory for tpu_custom_call.1']
    #allocation5 [shape = 'u8[4096]{0}', space=vmem, size = 0x1000, scoped, tag = 'output window, operand 0, single buffered']
    %8 = vsyncpa [#allocation3], 0
    %9 = vsyncpa [#allocation4], 0
    // Predicated region
    $region2: #{tpu_custom_call.1} parent=1 // pred_check
      _
    $region3: #{tpu_custom_call.1} parent=1 // pred_check_branch
      %11 = sbr.rel (0) target = $region5
    $region4: #{tpu_custom_call.1} parent=1 // pred_region
      _
    $region5: #{tpu_custom_call.1} parent=1 // pred_fallthru
      _
    // Predicated region
    $region6: #{tpu_custom_call.1} parent=1 // pred_check
      _
    $region7: #{tpu_custom_call.1} parent=1 // pred_check_branch
      %13 = sbr.rel (0) target = $region9
    $region8: #{tpu_custom_call.1} parent=1 // pred_region
      %s15 = ssub.s32 128, 128
      %16 = vsyncadd [#allocation3], %s15
      %s18 = sshll.u32 [#allocation2], 4
      %s19 = int_to_ptr.vmem [resolvable:$true] %s18
      %21 = dma.hbm_to_vmem [thread:$0]  %s1, 128, %s19, [#allocation3]
    $region9: #{tpu_custom_call.1} parent=1 // pred_fallthru
      _
    // Predicated region
    $region10: #{tpu_custom_call.1} parent=1 // pred_check
      _
    $region11: #{tpu_custom_call.1} parent=1 // pred_check_branch
      %23 = sbr.rel (0) target = $region13
    $region12: #{tpu_custom_call.1} parent=1 // pred_region
      _
    $region13: #{tpu_custom_call.1} parent=1 // pred_fallthru
      _
    // Predicated region
    $region14: #{tpu_custom_call.1} parent=1 // pred_check
      _
    $region15: #{tpu_custom_call.1} parent=1 // pred_check_branch
      %25 = sbr.rel (0) target = $region17
    $region16: #{tpu_custom_call.1} parent=1 // pred_region
      %26 = dma.done [#allocation3], 128
    $region17: #{tpu_custom_call.1} parent=1 // pred_fallthru
      _
    %v27 = vld [vmem:[%s0] sm:$0xff]
    %v28 = vld [vmem:[#allocation2] sm:$0xff]
    %v29 = vld [vmem:[%s2] sm:$0xff]
    %s30 = smul.u32 0, 8
    %v31 = vlaneseq
    %v32 = vshrl.u32 %v31, 7
    %v33 = vstv %s30
    %v34 = vadd.s32 %v33, %v32
    %vm35 = vcmp.lt.s32.totalorder %v34, 8
    %v36 = vsel %vm35, 1, 0
    %v37 = vcvt.s32.f32 %v36
    %vm38 = vcmask 261120
    %v39 = vsel %vm38, %v27, -inf
    %40 = vmax.xlane.f32.xlu0 %v39
    %v41 = vpop.xlane.xlu0 %40
    %v42 = vsub.f32 %v27, %v41
    %v43 = vmul.f32 %v42, 1.442695
    %v44 = vpow.pop %v43
    %v45 = vsel %vm38, %v44, 0.0
    %46 = vadd.xlane.f32.xlu0 %v45
    %v47 = vpop.xlane.xlu0 %46
    %v48 = vlog2.pop %v47
    %v49 = vmul.f32 %v48, 0.6931472
    %v50 = vadd.f32 %v41, %v49
    %v51 = vmul.f32 %v42, 0.5
    %v52 = vmul.f32 %v51, 1.442695
    %v53 = vpow.pop %v52
    %v54 = vsel %vm38, %v53, 0.0
    %55 = vadd.xlane.f32.xlu0 %v54
    %v56 = vpop.xlane.xlu0 %55
    %v57 = vlog2.pop %v56
    %v58 = vmul.f32 %v57, 0.6931472
    %v59 = vsub.f32 %v51, %v58
    %v60 = vrcp.pop %v56
    %v61 = vmul.f32 %v53, %v60
    %v62 = vsel %vm38, %v28, -inf
    %63 = vmax.xlane.f32.xlu0 %v62
    %v64 = vpop.xlane.xlu0 %63
    %v65 = vsub.f32 %v28, %v64
    %v66 = vmul.f32 %v65, 0.5
    %v67 = vmul.f32 %v66, 1.442695
    %v68 = vpow.pop %v67
    %v69 = vsel %vm38, %v68, 0.0
    %70 = vadd.xlane.f32.xlu0 %v69
    %v71 = vpop.xlane.xlu0 %70
    %v72 = vlog2.pop %v71
    %v73 = vmul.f32 %v72, 0.6931472
    %v74 = vsub.f32 %v66, %v73
    %v75 = vrcp.pop %v71
    %v76 = vmul.f32 %v68, %v75
    %v77 = vlaneseq
    %v78 = vand.u32 %v77, 127
    %79 = vset.pattern.permute.xlu0 0
    %80 = vperm.xlu0 %79, %v29
    %v81 = vpop.permute.xlu0 %80
    %vm82 = vcmp.eq.s32.totalorder %v78, %v81
    %v83 = vsel %vm82, 1, 0
    %v84 = vcvt.s32.f32 %v83
    %v85 = vmul.f32 %v84, %v27
    %v86 = vsel %vm38, %v85, 0.0
    %87 = vadd.xlane.f32.xlu0 %v86
    %v88 = vpop.xlane.xlu0 %87
    %v89 = vsub.f32 %v50, %v88
    %v90 = vmul.f32 %v37, %v89
    %vm91 = vcmask 7168
    %v92 = vsel %vm91, %v90, 0.0
    %93 = vadd.xlane.f32.xlu0 %v92
    %v94 = vpop.xlane.xlu0 %93
    %v95 = vrot.slane %v94, 4
    %v96 = vadd.f32 %v94, %v95
    %v97 = vrot.slane %v96, 2
    %v98 = vadd.f32 %v96, %v97
    %v99 = vrot.slane %v98, 1
    %v100 = vadd.f32 %v98, %v99
    %s101 = vtos %v100
    %v102 = vsub.f32 %v76, %v61
    %v103 = vsub.f32 %v74, %v59
    %v104 = vmul.f32 %v102, %v103
    %v105 = vsel %vm38, %v104, 0.0
    %106 = vadd.xlane.f32.xlu0 %v105
    %v107 = vpop.xlane.xlu0 %106
    %v108 = vmul.f32 %v37, %v107
    %v109 = vsel %vm91, %v108, 0.0
    %110 = vadd.xlane.f32.xlu0 %v109
    %v111 = vpop.xlane.xlu0 %110
    %v112 = vrot.slane %v111, 4
    %v113 = vadd.f32 %v111, %v112
    %v114 = vrot.slane %v113, 2
    %v115 = vadd.f32 %v113, %v114
    %v116 = vrot.slane %v115, 1
    %v117 = vadd.f32 %v115, %v116
    %s118 = vtos %v117
    %s119 = smul.f32 %s101, 0.125
    %s120 = smul.f32 %s118, 4.0
    %s121 = smul.f32 %s120, 0.125
    %s122 = sadd.f32 %s119, %s121
    %vm123 = vcmp.eq.s32.totalorder %v32, 0
    %vm124 = vcmp.eq.s32.totalorder %v78, 0
    %vm125 = vmand %vm123, %vm124
    %v126 = vstv %s122
    %v127 = vsel %vm125, %v126, 0.0
    %128 = vst [vmem:[#allocation5] sm:$0xff] %v127
    // Predicated region
    $region18: #{tpu_custom_call.1} parent=1 // pred_check
      _
    $region19: #{tpu_custom_call.1} parent=1 // pred_check_branch
      %130 = sbr.rel (0) target = $region21
    $region20: #{tpu_custom_call.1} parent=1 // pred_region
      %s132 = ssub.s32 128, 128
      %133 = vsyncadd [#allocation4], %s132
      %s135 = sshll.u32 [#allocation5], 4
      %s136 = int_to_ptr.vmem [resolvable:$true] %s135
      %138 = dma.vmem_to_hbm [thread:$0]  %s136, 128, %s3, [#allocation4]
    $region21: #{tpu_custom_call.1} parent=1 // pred_fallthru
      _
    // Predicated region
    $region22: #{tpu_custom_call.1} parent=1 // pred_check
      _
    $region23: #{tpu_custom_call.1} parent=1 // pred_check_branch
      %140 = sbr.rel (0) target = $region25
    $region24: #{tpu_custom_call.1} parent=1 // pred_region
      %141 = dma.done [#allocation4], 128
    $region25: #{tpu_custom_call.1} parent=1 // pred_fallthru
      _
    %142 = vsyncpa [#allocation3], 1
    %143 = vsyncpa [#allocation4], 1

</llo_original>
